<compile_context>
chip_gen: v7x
topology: tpu7x:2x2x1
jax: 0.10.0
libtpu: 0.0.40
codegen_flags: <defaults>
</compile_context>

<pallas_src>
import jax
import jax.numpy as jnp
from jax.experimental import pallas as pl
from jax.experimental.pallas import tpu as pltpu

IN_FEATURES = 3
OUT_FEATURES = 4


def _linear_kernel(x_ref, wt_ref, b_ref, o_ref):
    # y = x @ W.T + b with K=3, N=4 -> three VPU FMAs, nothing hits the MXU.
    x = x_ref[...]            # (tm, IN)   natural row-major layout
    wt = wt_ref[...]          # (IN, OUT)
    b = b_ref[...]            # (1, OUT)
    acc = b + x[:, 0:1] * wt[0:1, :]
    acc = acc + x[:, 1:2] * wt[1:2, :]
    acc = acc + x[:, 2:3] * wt[2:3, :]
    o_ref[...] = acc.astype(o_ref.dtype)


def _vmem_limit(bytes_needed):
    # Explicit scoped-VMEM request (default is 16/32 MiB, far below physical).
    return max(bytes_needed, 32 * 1024 * 1024)


def linear_pallas(x, weight, bias, *, tile_m=8192, small_batch_threshold=8192):
    """x: (B, 3) f32, weight: (4, 3) f32, bias: (4,) f32 -> (B, 4) f32."""
    B, IN = x.shape
    OUT, IN2 = weight.shape
    assert IN == IN_FEATURES and IN2 == IN_FEATURES and OUT == OUT_FEATURES

    # Only the tiny parameters get reshaped in the wrapper (48 B + 16 B).
    wt = weight.T                   # (IN, OUT)
    b2 = bias.reshape(1, OUT)       # 2-D for TPU-friendly broadcast

    if B <= small_batch_threshold:
        # Single shot: no grid, no pipeline machinery, whole problem in VMEM.
        # Each (row, 3)/(row, 4) block lane-pads to 128 lanes -> ~1 KiB/row.
        rows_padded = (B + 7) // 8 * 8
        return pl.pallas_call(
            _linear_kernel,
            out_shape=jax.ShapeDtypeStruct((B, OUT), x.dtype),
            in_specs=[
                pl.BlockSpec(memory_space=pltpu.MemorySpace.VMEM),
                pl.BlockSpec(memory_space=pltpu.MemorySpace.VMEM),
                pl.BlockSpec(memory_space=pltpu.MemorySpace.VMEM),
            ],
            out_specs=pl.BlockSpec(memory_space=pltpu.MemorySpace.VMEM),
            compiler_params=pltpu.CompilerParams(
                vmem_limit_bytes=_vmem_limit(1024 * rows_padded + (2 << 20))),
        )(x, wt, b2)

    # Large batch: stream row tiles in the natural layout.  No pad/slice:
    # grid = cdiv(B, tm) and Pallas clips the ragged last block on store.
    tm = max(8, (tile_m // 8) * 8)
    # Keep >= 2 balanced tiles for mid-size B (dual-TC on v7x; no-op on 1-TC).
    tm = min(tm, ((pl.cdiv(B, 2) + 7) // 8) * 8)
    n_tiles = pl.cdiv(B, tm)

    # Double-buffered input + output tiles; each row lane-pads to 512 B.
    vmem_needed = 4 * tm * 512 + (4 << 20)
    cost = pl.CostEstimate(
        flops=2 * IN * OUT * B,
        transcendentals=0,
        bytes_accessed=4 * B * (IN + OUT) + 4 * (IN * OUT + OUT))

    # TODO(synk): for B >> 100K on v7x, pack two rows per sublane group
    # (view x as (B/2, 6) with an (6, 8) replicated weight) to fill the
    # half-empty sublanes that make the FMA chain VALU-bound vs 3.2 TB/s HBM.
    return pl.pallas_call(
        _linear_kernel,
        out_shape=jax.ShapeDtypeStruct((B, OUT), x.dtype),
        grid=(n_tiles,),
        in_specs=[
            pl.BlockSpec((tm, IN), lambda i: (i, 0)),
            pl.BlockSpec((IN, OUT), lambda i: (0, 0)),
            pl.BlockSpec((1, OUT), lambda i: (0, 0)),
        ],
        out_specs=pl.BlockSpec((tm, OUT), lambda i: (i, 0)),
        compiler_params=pltpu.CompilerParams(
            dimension_semantics=("parallel",),
            vmem_limit_bytes=_vmem_limit(vmem_needed)),
        cost_estimate=cost,
    )(x, wt, b2)


if __name__ == "__main__":
    key = jax.random.PRNGKey(0)
    kx, kw, kb, kx2 = jax.random.split(key, 4)

    B, IN, OUT = 8, IN_FEATURES, OUT_FEATURES

    x = jax.random.normal(kx, (B, IN), dtype=jnp.float32)
    # Deterministic parameter init (Kaiming-uniform-ish scale, like nn.Linear).
    bound = 1.0 / jnp.sqrt(jnp.float32(IN))
    weight = jax.random.uniform(kw, (OUT, IN), jnp.float32, -bound, bound)
    bias = jax.random.uniform(kb, (OUT,), jnp.float32, -bound, bound)

    # Default path: small batch -> single-shot, no grid, whole problem in VMEM.
    linear_jit = jax.jit(linear_pallas)
    y = linear_jit(x, weight, bias)
    jax.block_until_ready(y)
    y_ref = x @ weight.T + bias
    assert y.shape == (B, OUT)
    assert jnp.allclose(y, y_ref, atol=1e-5, rtol=1e-5)

    # Exercise the tiled/grid path (incl. ragged last block clipping) at a
    # small shape by shrinking the knobs; same kernel body, same semantics.
    B2 = 20
    x2 = jax.random.normal(kx2, (B2, IN), dtype=jnp.float32)
    tiled_jit = jax.jit(lambda a, w, b: linear_pallas(
        a, w, b, tile_m=8, small_batch_threshold=4))
    y2 = tiled_jit(x2, weight, bias)
    jax.block_until_ready(y2)
    y2_ref = x2 @ weight.T + bias
    assert y2.shape == (B2, OUT)
    assert jnp.allclose(y2, y2_ref, atol=1e-5, rtol=1e-5)

    print("KERNEL_OK")
</pallas_src>

<mosaic_0001>
module attributes {stable_mosaic.version = 11 : i64} {
  func.func @_linear_kernel(%arg0: memref<8x3xf32, #tpu.memory_space<vmem>>, %arg1: memref<3x4xf32, #tpu.memory_space<vmem>>, %arg2: memref<1x4xf32, #tpu.memory_space<vmem>>, %arg3: memref<8x4xf32, #tpu.memory_space<vmem>>) attributes {dimension_semantics = [], scalar_prefetch = 0 : i64, scratch_operands = 0 : i64, tpu.core_type = #tpu.core_type<tc>} {
    %c0 = arith.constant 0 : index
    %c0_0 = arith.constant 0 : index
    %0 = vector.load %arg0[%c0, %c0_0] : memref<8x3xf32, #tpu.memory_space<vmem>>, vector<8x3xf32>
    %c0_1 = arith.constant 0 : index
    %c0_2 = arith.constant 0 : index
    %1 = vector.load %arg1[%c0_1, %c0_2] : memref<3x4xf32, #tpu.memory_space<vmem>>, vector<3x4xf32>
    %c0_3 = arith.constant 0 : index
    %c0_4 = arith.constant 0 : index
    %2 = vector.load %arg2[%c0_3, %c0_4] : memref<1x4xf32, #tpu.memory_space<vmem>>, vector<1x4xf32>
    %3 = vector.extract_strided_slice %0 {offsets = [0, 0], sizes = [8, 1], strides = [1, 1]} : vector<8x3xf32> to vector<8x1xf32>
    %4 = vector.extract_strided_slice %1 {offsets = [0, 0], sizes = [1, 4], strides = [1, 1]} : vector<3x4xf32> to vector<1x4xf32>
    %5 = vector.broadcast %3 : vector<8x1xf32> to vector<8x4xf32>
    %6 = vector.broadcast %4 : vector<1x4xf32> to vector<8x4xf32>
    %7 = arith.mulf %5, %6 : vector<8x4xf32>
    %8 = vector.broadcast %2 : vector<1x4xf32> to vector<8x4xf32>
    %9 = arith.addf %8, %7 : vector<8x4xf32>
    %10 = vector.extract_strided_slice %0 {offsets = [0, 1], sizes = [8, 1], strides = [1, 1]} : vector<8x3xf32> to vector<8x1xf32>
    %11 = vector.extract_strided_slice %1 {offsets = [1, 0], sizes = [1, 4], strides = [1, 1]} : vector<3x4xf32> to vector<1x4xf32>
    %12 = vector.broadcast %10 : vector<8x1xf32> to vector<8x4xf32>
    %13 = vector.broadcast %11 : vector<1x4xf32> to vector<8x4xf32>
    %14 = arith.mulf %12, %13 : vector<8x4xf32>
    %15 = arith.addf %9, %14 : vector<8x4xf32>
    %16 = vector.extract_strided_slice %0 {offsets = [0, 2], sizes = [8, 1], strides = [1, 1]} : vector<8x3xf32> to vector<8x1xf32>
    %17 = vector.extract_strided_slice %1 {offsets = [2, 0], sizes = [1, 4], strides = [1, 1]} : vector<3x4xf32> to vector<1x4xf32>
    %18 = vector.broadcast %16 : vector<8x1xf32> to vector<8x4xf32>
    %19 = vector.broadcast %17 : vector<1x4xf32> to vector<8x4xf32>
    %20 = arith.mulf %18, %19 : vector<8x4xf32>
    %21 = arith.addf %15, %20 : vector<8x4xf32>
    %c0_5 = arith.constant 0 : index
    %c0_6 = arith.constant 0 : index
    %22 = vector.load %arg3[%c0_5, %c0_6] : memref<8x4xf32, #tpu.memory_space<vmem>>, vector<8x4xf32>
    tpu.vector_store %arg3[%c0_5, %c0_6], %21 {strides = array<i32>} : memref<8x4xf32, #tpu.memory_space<vmem>>, vector<8x4xf32>,
    return
  }
}

</mosaic_0001>

<llo_original>
// kernel: linear_pallas.1
$region0: #{linear_pallas.1}
  #allocation0 [shape = 'u32[]', space=smem, size = 0x4, offset = 0x4, fixed_abs, tag = 'smem constant byte address 0x4 - core index']
  #allocation1 [shape = 'u32[144,128]{1,0:T(1,128)}', space=vmem, size = 0x12000, scoped, tag = 'internal scratch']
  %s0 = inlined_call_operand.vmem [shape: f32[8,3], index: 0, kind: input, shape index: {}]
  %s1 = inlined_call_operand.vmem [shape: f32[3,4], index: 1, kind: input, shape index: {}]
  %s2 = inlined_call_operand.vmem [shape: f32[1,4], index: 2, kind: input, shape index: {}]
  %s3 = inlined_call_operand.vmem [shape: f32[8,4], index: 3, kind: output, shape index: {}]
  %s4 = sld [smem:[#allocation0]]
  $region22: #{linear_pallas.1} parent=0
    _
  %s6 = ssub.s32 1, %s4
  %s7 = scalar_select 0, %s6, %s4
  // Predicated region
  $region2: #{linear_pallas.1} parent=0 // pred_check
    _
  $region3: #{linear_pallas.1} parent=0 // pred_check_branch
    %9 = sbr.rel (0) target = $region5
  $region4: #{linear_pallas.1} parent=0 // pred_region
    _
  $region5: #{linear_pallas.1} parent=0 // pred_fallthru
    _
  // Predicated region
  $region6: #{linear_pallas.1} parent=0 // pred_check
    _
  $region7: #{linear_pallas.1} parent=0 // pred_check_branch
    %11 = sbr.rel (0) target = $region9
  $region8: #{linear_pallas.1} parent=0 // pred_region
    _
  $region9: #{linear_pallas.1} parent=0 // pred_fallthru
    _
  // Predicated region
  $region10: #{linear_pallas.1} parent=0 // pred_check
    _
  $region11: #{linear_pallas.1} parent=0 // pred_check_branch
    %13 = sbr.rel (0) target = $region13
  $region12: #{linear_pallas.1} parent=0 // pred_region
    _
  $region13: #{linear_pallas.1} parent=0 // pred_fallthru
    _
  %v14 = vld [vmem:[%s0] sm:$0xff]
  %v15 = vld [vmem:[%s1] sm:$0x7]
  %v16 = vld [vmem:[%s2] sm:$0x1]
  %18 = vset.pattern.permute.xlu0 0
  %19 = vperm.xlu0 %18, %v14
  %v20 = vpop.permute.xlu0 %19
  %v22 = vlaneseq
  %v23 = vshrl.u32 %v22, 7
  %v24 = vsub.s32 0, %v23
  %v25 = vrot.slane %v15, %v24
  %v26 = vmul.f32 %v20, %v25
  %v28 = vlaneseq
  %v29 = vshrl.u32 %v28, 7
  %v30 = vsub.s32 0, %v29
  %v31 = vrot.slane %v16, %v30
  %v33 = vadd.f32 %v31, %v26
  %34 = vset.pattern.permute.xlu0 1
  %35 = vperm.xlu0 %34, %v14
  %v36 = vpop.permute.xlu0 %35
  %v38 = vlaneseq
  %v39 = vshrl.u32 %v38, 7
  %v40 = vsub.s32 1, %v39
  %v41 = vrot.slane %v15, %v40
  %v42 = vmul.f32 %v36, %v41
  %v43 = vadd.f32 %v33, %v42
  %44 = vset.pattern.permute.xlu0 2
  %45 = vperm.xlu0 %44, %v14
  %v46 = vpop.permute.xlu0 %45
  %v48 = vlaneseq
  %v49 = vshrl.u32 %v48, 7
  %v50 = vsub.s32 2, %v49
  %v51 = vrot.slane %v15, %v50
  %v52 = vmul.f32 %v46, %v51
  %v53 = vadd.f32 %v43, %v52
  %vm54 = vcmask 31744
  %55 = vst.msk [vmem:[%s3] sm:$0xff] %vm54, %v53
  // Predicated region
  $region14: #{linear_pallas.1} parent=0 // pred_check
    _
  $region15: #{linear_pallas.1} parent=0 // pred_check_branch
    %57 = sbr.rel (0) target = $region17
  $region16: #{linear_pallas.1} parent=0 // pred_region
    _
  $region17: #{linear_pallas.1} parent=0 // pred_fallthru
    _
  // Predicated region
  $region18: #{linear_pallas.1} parent=0 // pred_check
    _
  $region19: #{linear_pallas.1} parent=0 // pred_check_branch
    %59 = sbr.rel (0) target = $region21
  $region20: #{linear_pallas.1} parent=0 // pred_region
    _
  $region21: #{linear_pallas.1} parent=0 // pred_fallthru
    _

</llo_original>
